<compile_context>
chip_gen: v6e
topology: v6e:2x2x1
jax: 0.10.0
libtpu: 0.0.40
codegen_flags: <defaults>
</compile_context>

<pallas_src>
import functools

import jax
import jax.numpy as jnp
from jax.experimental import pallas as pl
from jax.experimental.pallas import tpu as pltpu

LANE = 128          # lane width: hidden / output feature dims padded to this
ROW_ALIGN = 16      # batch-tile row alignment (bf16 output sublane packing)
NEG_FILL = -1e30    # finite "minus infinity" for padded logit columns


def _round_up(n, m):
    return ((n + m - 1) // m) * m


def _num_tensorcores():
    """v7x has 2 TensorCores per chip; v5e/v6e have 1."""
    try:
        kind = jax.devices()[0].device_kind.lower()
    except Exception:
        return 1
    return 2 if ("v7" in kind or "7x" in kind) else 1


def actor_kernel(x_ref, w1_ref, b1_ref, w2_ref, b2_ref, out_ref):
    # shared layer: h = relu(x @ W1 + b1)   (bf16 MXU matmul, f32 accumulate)
    x = x_ref[...].astype(jnp.bfloat16)                       # (TB, state_dim)
    h = jnp.dot(x, w1_ref[...], preferred_element_type=jnp.float32)
    h = jnp.maximum(h + b1_ref[...], 0.0)                     # padded lanes -> 0

    # actor head: logits = h @ W2 + b2  (padded cols of b2 are -1e30)
    logits = jnp.dot(h.astype(jnp.bfloat16), w2_ref[...],
                     preferred_element_type=jnp.float32) + b2_ref[...]

    # numerically-stable log_softmax over the lane-dense (padded) last dim
    m = jnp.max(logits, axis=-1, keepdims=True)               # real max (pad = -1e30)
    shifted = logits - m
    lse = jnp.log(jnp.sum(jnp.exp(shifted), axis=-1, keepdims=True))
    out_ref[...] = (shifted - lse).astype(out_ref.dtype)      # bf16 writeback


def prepare_actor_params(w1, b1, w2, b2):
    """One-time padding/casting of the parameters (kept out of the per-call path)."""
    state_dim, hidden = w1.shape
    out_dim = w2.shape[1]
    h_pad = _round_up(hidden, LANE)
    o_pad = _round_up(out_dim, LANE)

    w1_p = jnp.pad(w1, ((0, 0), (0, h_pad - hidden))).astype(jnp.bfloat16)
    b1_p = jnp.pad(b1.reshape(1, -1), ((0, 0), (0, h_pad - hidden))).astype(jnp.float32)
    w2_p = jnp.pad(w2, ((0, h_pad - hidden), (0, o_pad - out_dim))).astype(jnp.bfloat16)
    b2_p = jnp.pad(b2.reshape(1, -1), ((0, 0), (0, o_pad - out_dim)),
                   constant_values=NEG_FILL).astype(jnp.float32)
    return w1_p, b1_p, w2_p, b2_p


@functools.partial(jax.jit, static_argnames=("out_dim", "n_tiles"))
def actor_forward(x, w1_p, b1_p, w2_p, b2_p, *, out_dim, n_tiles=1):
    """Fused shared_layer -> fc2 -> log_softmax.  Grid = n_tiles batch tiles."""
    batch, state_dim = x.shape
    h_pad = w1_p.shape[1]
    o_pad = w2_p.shape[1]

    b_pad = _round_up(batch, ROW_ALIGN * n_tiles)
    if b_pad != batch:
        x = jnp.pad(x, ((0, b_pad - batch), (0, 0)))
    tile = b_pad // n_tiles

    const0 = lambda i: (0, 0)   # weights/biases stay VMEM-resident across tiles

    flops = 2 * b_pad * (state_dim * h_pad + h_pad * o_pad)
    bytes_accessed = (b_pad * state_dim * 4          # streamed x (f32, unpadded cols)
                      + w1_p.size * 2 + w2_p.size * 2
                      + b1_p.size * 4 + b2_p.size * 4
                      + b_pad * o_pad * 2)           # bf16 output writeback

    out_padded = pl.pallas_call(
        actor_kernel,
        out_shape=jax.ShapeDtypeStruct((b_pad, o_pad), jnp.bfloat16),
        grid=(n_tiles,),
        in_specs=[
            pl.BlockSpec((tile, state_dim), lambda i: (i, 0)),  # streamed x (unpadded K)
            pl.BlockSpec((state_dim, h_pad), const0),           # resident W1
            pl.BlockSpec((1, h_pad), const0),                   # resident b1
            pl.BlockSpec((h_pad, o_pad), const0),               # resident W2
            pl.BlockSpec((1, o_pad), const0),                   # resident b2
        ],
        out_specs=pl.BlockSpec((tile, o_pad), lambda i: (i, 0)),
        compiler_params=pltpu.CompilerParams(
            dimension_semantics=("parallel",)),                 # shards 2 TCs on v7x
        cost_estimate=pl.CostEstimate(
            flops=flops,
            transcendentals=b_pad * o_pad,
            bytes_accessed=bytes_accessed),
    )(x, w1_p, b1_p, w2_p, b2_p)

    return out_padded[:batch, :out_dim]


def init_linear(key, fan_in, fan_out):
    """PyTorch nn.Linear default init: U(-1/sqrt(fan_in), 1/sqrt(fan_in)).
    Returns W transposed to (fan_in, fan_out) and b as (1, fan_out)."""
    kw, kb = jax.random.split(key)
    bound = 1.0 / jnp.sqrt(float(fan_in))
    w = jax.random.uniform(kw, (fan_in, fan_out), jnp.float32, -bound, bound)
    b = jax.random.uniform(kb, (1, fan_out), jnp.float32, -bound, bound)
    return w, b


if __name__ == "__main__":
    # Small A2C-style shapes: 64 states of dim 8 -> hidden 32 -> 4 actions.
    batch, state_dim, hidden, out_dim = 64, 8, 32, 4

    key = jax.random.PRNGKey(0)
    kx, k1, k2 = jax.random.split(key, 3)

    x = jax.random.normal(kx, (batch, state_dim), jnp.float32)
    w1, b1 = init_linear(k1, state_dim, hidden)   # shared_layer
    w2, b2 = init_linear(k2, hidden, out_dim)     # fc2

    # One-time parameter padding/casting (outside the per-call path).
    w1_p, b1_p, w2_p, b2_p = prepare_actor_params(w1, b1, w2, b2)

    n_tiles = _num_tensorcores()                  # 1 on v5e/v6e, 2 on v7x
    out = actor_forward(x, w1_p, b1_p, w2_p, b2_p, out_dim=out_dim, n_tiles=n_tiles)
    out = jax.block_until_ready(out)

    # Pure-JAX f32 reference of the fused forward.  Kernel uses bf16 MXU operands
    # and bf16 output storage (deliberate precision trade-off for an actor head),
    # so the tolerance is relaxed accordingly.
    h_ref = jnp.maximum(x @ w1 + b1, 0.0)
    ref = jax.nn.log_softmax(h_ref @ w2 + b2, axis=-1)
    out_f32 = out.astype(jnp.float32)
    assert out.shape == ref.shape, "shape mismatch vs reference"
    assert bool(jnp.all(jnp.isfinite(out_f32))), "non-finite values in kernel output"
    assert jnp.allclose(out_f32, ref, atol=5e-2, rtol=5e-2), "mismatch vs reference"

    print("KERNEL_OK")
</pallas_src>

<mosaic_0001>
module attributes {stable_mosaic.version = 11 : i64} {
  func.func @actor_kernel(%arg0: i32, %arg1: memref<64x8xf32, #tpu.memory_space<vmem>>, %arg2: memref<8x128xbf16, #tpu.memory_space<vmem>>, %arg3: memref<1x128xf32, #tpu.memory_space<vmem>>, %arg4: memref<128x128xbf16, #tpu.memory_space<vmem>>, %arg5: memref<1x128xf32, #tpu.memory_space<vmem>>, %arg6: memref<64x128xbf16, #tpu.memory_space<vmem>>) attributes {dimension_semantics = [#tpu.dimension_semantics<parallel>], iteration_bounds = array<i64: 1>, scalar_prefetch = 0 : i64, scratch_operands = 0 : i64, tpu.core_type = #tpu.core_type<tc>, window_params = [{transform_indices = @transform_0, window_bounds = array<i64: 64, 8>}, {pipeline_mode = #tpu.pipeline_mode<synchronous>, transform_indices = @transform_1, window_bounds = array<i64: 8, 128>}, {pipeline_mode = #tpu.pipeline_mode<synchronous>, transform_indices = @transform_2, window_bounds = array<i64: 1, 128>}, {pipeline_mode = #tpu.pipeline_mode<synchronous>, transform_indices = @transform_3, window_bounds = array<i64: 128, 128>}, {pipeline_mode = #tpu.pipeline_mode<synchronous>, transform_indices = @transform_4, window_bounds = array<i64: 1, 128>}, {transform_indices = @transform_5, window_bounds = array<i64: 64, 128>}]} {
    %c0 = arith.constant 0 : index
    %c0_0 = arith.constant 0 : index
    %0 = vector.load %arg1[%c0, %c0_0] : memref<64x8xf32, #tpu.memory_space<vmem>>, vector<64x8xf32>
    %1 = arith.truncf %0 : vector<64x8xf32> to vector<64x8xbf16>
    %c0_1 = arith.constant 0 : index
    %c0_2 = arith.constant 0 : index
    %2 = vector.load %arg2[%c0_1, %c0_2] : memref<8x128xbf16, #tpu.memory_space<vmem>>, vector<8x128xbf16>
    %cst = arith.constant dense<0.000000e+00> : vector<64x128xf32>
    %3 = tpu.matmul %1, %2, %cst {dimension_numbers = #tpu.dot_dimension_numbers<[1], [0], [0], [1], [0, 0, 1, 1], [], []>} : vector<64x8xbf16>, vector<8x128xbf16>, vector<64x128xf32> -> vector<64x128xf32>
    %c0_3 = arith.constant 0 : index
    %c0_4 = arith.constant 0 : index
    %4 = vector.load %arg3[%c0_3, %c0_4] : memref<1x128xf32, #tpu.memory_space<vmem>>, vector<1x128xf32>
    %5 = vector.broadcast %4 : vector<1x128xf32> to vector<64x128xf32>
    %6 = arith.addf %3, %5 : vector<64x128xf32>
    %cst_5 = arith.constant 0.000000e+00 : f32
    %7 = vector.broadcast %cst_5 : f32 to vector<64x128xf32>
    %8 = arith.maximumf %6, %7 : vector<64x128xf32>
    %9 = arith.truncf %8 : vector<64x128xf32> to vector<64x128xbf16>
    %c0_6 = arith.constant 0 : index
    %c0_7 = arith.constant 0 : index
    %10 = vector.load %arg4[%c0_6, %c0_7] : memref<128x128xbf16, #tpu.memory_space<vmem>>, vector<128x128xbf16>
    %cst_8 = arith.constant dense<0.000000e+00> : vector<64x128xf32>
    %11 = tpu.matmul %9, %10, %cst_8 {dimension_numbers = #tpu.dot_dimension_numbers<[1], [0], [0], [1], [0, 0, 1, 1], [], []>} : vector<64x128xbf16>, vector<128x128xbf16>, vector<64x128xf32> -> vector<64x128xf32>
    %c0_9 = arith.constant 0 : index
    %c0_10 = arith.constant 0 : index
    %12 = vector.load %arg5[%c0_9, %c0_10] : memref<1x128xf32, #tpu.memory_space<vmem>>, vector<1x128xf32>
    %13 = vector.broadcast %12 : vector<1x128xf32> to vector<64x128xf32>
    %14 = arith.addf %11, %13 : vector<64x128xf32>
    %cst_11 = arith.constant dense<0xFF800000> : vector<64xf32>
    %15 = vector.multi_reduction <maximumf>, %14, %cst_11 [1] : vector<64x128xf32> to vector<64xf32>
    %16 = vector.shape_cast %15 : vector<64xf32> to vector<64x1xf32>
    %17 = vector.broadcast %16 : vector<64x1xf32> to vector<64x128xf32>
    %18 = arith.subf %14, %17 : vector<64x128xf32>
    %19 = math.exp %18 : vector<64x128xf32>
    %cst_12 = arith.constant dense<0.000000e+00> : vector<64xf32>
    %20 = vector.multi_reduction <add>, %19, %cst_12 [1] : vector<64x128xf32> to vector<64xf32>
    %21 = vector.shape_cast %20 : vector<64xf32> to vector<64x1xf32>
    %22 = math.log %21 : vector<64x1xf32>
    %23 = vector.broadcast %22 : vector<64x1xf32> to vector<64x128xf32>
    %24 = arith.subf %18, %23 : vector<64x128xf32>
    %25 = arith.truncf %24 : vector<64x128xf32> to vector<64x128xbf16>
    %c0_13 = arith.constant 0 : index
    %c0_14 = arith.constant 0 : index
    %26 = vector.load %arg6[%c0_13, %c0_14] : memref<64x128xbf16, #tpu.memory_space<vmem>>, vector<64x128xbf16>
    tpu.vector_store %arg6[%c0_13, %c0_14], %25 {strides = array<i32>} : memref<64x128xbf16, #tpu.memory_space<vmem>>, vector<64x128xbf16>,
    return
  }
  func.func @transform_0(%arg0: i32) -> (i32, i32) {
    %c0_i32 = arith.constant 0 : i32
    %c0_i32_0 = arith.constant 0 : i32
    return %arg0, %c0_i32 : i32, i32
  }
  func.func @transform_1(%arg0: i32) -> (i32, i32) {
    %c0_i32 = arith.constant 0 : i32
    %c0_i32_0 = arith.constant 0 : i32
    %c0_i32_1 = arith.constant 0 : i32
    return %c0_i32, %c0_i32_0 : i32, i32
  }
  func.func @transform_2(%arg0: i32) -> (i32, i32) {
    %c0_i32 = arith.constant 0 : i32
    %c0_i32_0 = arith.constant 0 : i32
    %c0_i32_1 = arith.constant 0 : i32
    return %c0_i32, %c0_i32_0 : i32, i32
  }
  func.func @transform_3(%arg0: i32) -> (i32, i32) {
    %c0_i32 = arith.constant 0 : i32
    %c0_i32_0 = arith.constant 0 : i32
    %c0_i32_1 = arith.constant 0 : i32
    return %c0_i32, %c0_i32_0 : i32, i32
  }
  func.func @transform_4(%arg0: i32) -> (i32, i32) {
    %c0_i32 = arith.constant 0 : i32
    %c0_i32_0 = arith.constant 0 : i32
    %c0_i32_1 = arith.constant 0 : i32
    return %c0_i32, %c0_i32_0 : i32, i32
  }
  func.func @transform_5(%arg0: i32) -> (i32, i32) {
    %c0_i32 = arith.constant 0 : i32
    %c0_i32_0 = arith.constant 0 : i32
    return %arg0, %c0_i32 : i32, i32
  }
}

</mosaic_0001>

<llo_original>
// kernel: actor_forward.1
$region0: #{actor_forward.1}
  #allocation0 [shape = 'u32[]', space=smem, size = 0x4, offset = 0x4, fixed_abs, tag = 'smem constant byte address 0x4 - core index']
  #allocation1 [shape = 'u32[144,128]{1,0:T(1,128)}', space=vmem, size = 0x12000, scoped, tag = 'internal scratch']
  %s0 = inlined_call_operand.vmem [shape: f32[64,8], index: 0, kind: input, shape index: {}]
  %s1 = inlined_call_operand.vmem [shape: bf16[8,128], index: 1, kind: input, shape index: {}]
  %s2 = inlined_call_operand.vmem [shape: f32[1,128], index: 2, kind: input, shape index: {}]
  %s3 = inlined_call_operand.vmem [shape: bf16[128,128], index: 3, kind: input, shape index: {}]
  %s4 = inlined_call_operand.vmem [shape: f32[1,128], index: 4, kind: input, shape index: {}]
  %s5 = inlined_call_operand.vmem [shape: bf16[64,128], index: 5, kind: output, shape index: {}]
  %s6 = sld [smem:[#allocation0]]
  $region30: #{actor_forward.1} parent=0
    _
  %s8 = ssub.s32 1, %s6
  %s9 = scalar_select 0, %s8, %s6
  // Predicated region
  $region2: #{actor_forward.1} parent=0 // pred_check
    _
  $region3: #{actor_forward.1} parent=0 // pred_check_branch
    %11 = sbr.rel (0) target = $region5
  $region4: #{actor_forward.1} parent=0 // pred_region
    _
  $region5: #{actor_forward.1} parent=0 // pred_fallthru
    _
  // Predicated region
  $region6: #{actor_forward.1} parent=0 // pred_check
    _
  $region7: #{actor_forward.1} parent=0 // pred_check_branch
    %13 = sbr.rel (0) target = $region9
  $region8: #{actor_forward.1} parent=0 // pred_region
    _
  $region9: #{actor_forward.1} parent=0 // pred_fallthru
    _
  // Predicated region
  $region10: #{actor_forward.1} parent=0 // pred_check
    _
  $region11: #{actor_forward.1} parent=0 // pred_check_branch
    %15 = sbr.rel (0) target = $region13
  $region12: #{actor_forward.1} parent=0 // pred_region
    _
  $region13: #{actor_forward.1} parent=0 // pred_fallthru
    _
  // Predicated region
  $region14: #{actor_forward.1} parent=0 // pred_check
    _
  $region15: #{actor_forward.1} parent=0 // pred_check_branch
    %17 = sbr.rel (0) target = $region17
  $region16: #{actor_forward.1} parent=0 // pred_region
    _
  $region17: #{actor_forward.1} parent=0 // pred_fallthru
    _
  // Predicated region
  $region18: #{actor_forward.1} parent=0 // pred_check
    _
  $region19: #{actor_forward.1} parent=0 // pred_check_branch
    %19 = sbr.rel (0) target = $region21
  $region20: #{actor_forward.1} parent=0 // pred_region
    _
  $region21: #{actor_forward.1} parent=0 // pred_fallthru
    _
  %v21 = vld [vmem:[%s0] sm:$0xff]
  %v22 = vld [vmem:[%s0 + $0x8] sm:$0xff]
  %v23 = vld [vmem:[%s0 + $0x10] sm:$0xff]
  %v24 = vld [vmem:[%s0 + $0x18] sm:$0xff]
  %v25 = vld [vmem:[%s0 + $0x20] sm:$0xff]
  %v26 = vld [vmem:[%s0 + $0x28] sm:$0xff]
  %v27 = vld [vmem:[%s0 + $0x30] sm:$0xff]
  %v28 = vld [vmem:[%s0 + $0x38] sm:$0xff]
  %v29 = vpack.c.bf16 %v22, %v21
  %v30 = vpack.c.bf16 %v24, %v23
  %v31 = vpack.c.bf16 %v26, %v25
  %v32 = vpack.c.bf16 %v28, %v27
  %v33 = vld [vmem:[%s1] sm:$0xf]
  %v34 = vld [vmem:[%s2] sm:$0x1]
  %v36 = vlaneseq
  %v37 = vshrl.u32 %v36, 7
  %v38 = vsub.s32 0, %v37
  %v39 = vrot.slane %v34, %v38
  %vm41 = vcmask 64512
  %v43 = vsel %vm41, %v29, 0
  %v46 = vsel %vm41, %v30, 0
  %v49 = vsel %vm41, %v31, 0
  %v52 = vsel %vm41, %v32, 0
  %vm54 = vcmask 1043456
  %v56 = vsel %vm54, %v33, 0
  %58 = vmatprep.subr.bf16.mxu0 0
  %59 = vmatpush1.bf16.msra.mxu0 0
  %60 = vmatprep.subr.bf16.mxu0 0
  %61 = vmatpush1.bf16.msra.mxu0 0
  %62 = vmatprep.subr.bf16.mxu0 0
  %63 = vmatpush1.bf16.msra.mxu0 0
  %64 = vmatprep.subr.bf16.mxu0 0
  %65 = vmatpush1.bf16.msra.mxu0 0
  %66 = vmatprep.subr.bf16.mxu0 0
  %67 = vmatpush1.bf16.msra.mxu0 0
  %68 = vmatprep.subr.bf16.mxu0 0
  %69 = vmatpush1.bf16.msra.mxu0 0
  %70 = vmatprep.subr.bf16.mxu0 0
  %71 = vmatpush1.bf16.msra.mxu0 0
  %72 = vmatprep.subr.bf16.mxu0 0
  %73 = vmatpush1.bf16.msra.mxu0 %v56
  %74 = vmatprep.subr.bf16.mxu0 0
  %75 = vmatpush2.bf16.msra.mxu0 0
  %76 = vmatprep.subr.bf16.mxu0 0
  %77 = vmatpush2.bf16.msra.mxu0 0
  %78 = vmatprep.subr.bf16.mxu0 0
  %79 = vmatpush2.bf16.msra.mxu0 0
  %80 = vmatprep.subr.bf16.mxu0 0
  %81 = vmatpush2.bf16.msra.mxu0 0
  %82 = vmatprep.subr.bf16.mxu0 0
  %83 = vmatpush2.bf16.msra.mxu0 0
  %84 = vmatprep.subr.bf16.mxu0 0
  %85 = vmatpush2.bf16.msra.mxu0 0
  %86 = vmatprep.subr.bf16.mxu0 0
  %87 = vmatpush2.bf16.msra.mxu0 0
  %88 = vmatprep.subr.bf16.mxu0 0
  %89 = vmatpush2.bf16.msra.mxu0 0
  %90 = vmatprep.mubr.bf16.mxu0 0
  %91 = vmatmul.mubr.bf16.gmra.mxu0 %v43
  %v92 = vpop.f32.mrf.mxu0
  %v93 = vadd.f32 %v39, %v92
  %v94 = vpop.f32.mrf.mxu0
  %v95 = vpop.f32.mrf.mxu0
  %v96 = vadd.f32 %v39, %v95
  %v97 = vpop.f32.mrf.mxu0
  %98 = vmatprep.mubr.bf16.mxu0 0
  %99 = vmatmul.mubr.bf16.gmra.mxu0 %v46
  %v100 = vpop.f32.mrf.mxu0
  %v101 = vadd.f32 %v39, %v100
  %v102 = vpop.f32.mrf.mxu0
  %v103 = vpop.f32.mrf.mxu0
  %v104 = vadd.f32 %v39, %v103
  %v105 = vpop.f32.mrf.mxu0
  %106 = vmatprep.mubr.bf16.mxu0 0
  %107 = vmatmul.mubr.bf16.gmra.mxu0 %v49
  %v108 = vpop.f32.mrf.mxu0
  %v109 = vadd.f32 %v39, %v108
  %v110 = vpop.f32.mrf.mxu0
  %v111 = vpop.f32.mrf.mxu0
  %v112 = vadd.f32 %v39, %v111
  %v113 = vpop.f32.mrf.mxu0
  %114 = vmatprep.mubr.bf16.mxu0 0
  %115 = vmatmul.mubr.bf16.gmra.mxu0 %v52
  %v116 = vpop.f32.mrf.mxu0
  %v117 = vadd.f32 %v39, %v116
  %v118 = vpop.f32.mrf.mxu0
  %v119 = vpop.f32.mrf.mxu0
  %v120 = vadd.f32 %v39, %v119
  %v121 = vpop.f32.mrf.mxu0
  %122 = vdwg.mxu0
  %v123 = vmax.f32 %v93, 0.0
  %v124 = vmax.f32 %v96, 0.0
  %v125 = vmax.f32 %v101, 0.0
  %v126 = vmax.f32 %v104, 0.0
  %v127 = vmax.f32 %v109, 0.0
  %v128 = vmax.f32 %v112, 0.0
  %v129 = vmax.f32 %v117, 0.0
  %v130 = vmax.f32 %v120, 0.0
  %v131 = vpack.c.bf16 %v124, %v123
  %v132 = vpack.c.bf16 %v126, %v125
  %v133 = vpack.c.bf16 %v128, %v127
  %v134 = vpack.c.bf16 %v130, %v129
  %v135 = vld [vmem:[%s3] sm:$0xf]
  %v136 = vld [vmem:[%s3 + $0x4] sm:$0xf]
  %v137 = vld [vmem:[%s3 + $0x8] sm:$0xf]
  %v138 = vld [vmem:[%s3 + $0xc] sm:$0xf]
  %v139 = vld [vmem:[%s3 + $0x10] sm:$0xf]
  %v140 = vld [vmem:[%s3 + $0x14] sm:$0xf]
  %v141 = vld [vmem:[%s3 + $0x18] sm:$0xf]
  %v142 = vld [vmem:[%s3 + $0x1c] sm:$0xf]
  %v143 = vld [vmem:[%s3 + $0x20] sm:$0xf]
  %v144 = vld [vmem:[%s3 + $0x24] sm:$0xf]
  %v145 = vld [vmem:[%s3 + $0x28] sm:$0xf]
  %v146 = vld [vmem:[%s3 + $0x2c] sm:$0xf]
  %v147 = vld [vmem:[%s3 + $0x30] sm:$0xf]
  %v148 = vld [vmem:[%s3 + $0x34] sm:$0xf]
  %v149 = vld [vmem:[%s3 + $0x38] sm:$0xf]
  %v150 = vld [vmem:[%s3 + $0x3c] sm:$0xf]
  %v151 = vld [vmem:[%s4] sm:$0x1]
  %v153 = vlaneseq
  %v154 = vshrl.u32 %v153, 7
  %v155 = vsub.s32 0, %v154
  %v156 = vrot.slane %v151, %v155
  %v174 = vunpack.c.l.b16 %v135
  %v175 = vunpack.c.l.b16 %v136
  %v176 = vunpack.c.l.b16 %v137
  %v177 = vunpack.c.l.b16 %v138
  %v178 = vunpack.c.l.b16 %v139
  %v179 = vunpack.c.l.b16 %v140
  %v180 = vunpack.c.l.b16 %v141
  %v181 = vunpack.c.l.b16 %v142
  %v182 = vunpack.c.l.b16 %v143
  %v183 = vunpack.c.l.b16 %v144
  %v184 = vunpack.c.l.b16 %v145
  %v185 = vunpack.c.l.b16 %v146
  %v186 = vunpack.c.l.b16 %v147
  %v187 = vunpack.c.l.b16 %v148
  %v188 = vunpack.c.l.b16 %v149
  %v189 = vunpack.c.l.b16 %v150
  %v190 = vpack.c.b16 %v175, %v174
  %v191 = vpack.c.b16 %v177, %v176
  %v192 = vpack.c.b16 %v179, %v178
  %v193 = vpack.c.b16 %v181, %v180
  %v194 = vpack.c.b16 %v183, %v182
  %v195 = vpack.c.b16 %v185, %v184
  %v196 = vpack.c.b16 %v187, %v186
  %v197 = vpack.c.b16 %v189, %v188
  %206 = vmatprep.subr.bf16.mxu0 0
  %207 = vmatpush1.bf16.msra.mxu0 %v197
  %208 = vmatprep.subr.bf16.mxu0 0
  %209 = vmatpush1.bf16.msra.mxu0 %v196
  %210 = vmatprep.subr.bf16.mxu0 0
  %211 = vmatpush1.bf16.msra.mxu0 %v195
  %212 = vmatprep.subr.bf16.mxu0 0
  %213 = vmatpush1.bf16.msra.mxu0 %v194
  %214 = vmatprep.subr.bf16.mxu0 0
  %215 = vmatpush1.bf16.msra.mxu0 %v193
  %216 = vmatprep.subr.bf16.mxu0 0
  %217 = vmatpush1.bf16.msra.mxu0 %v192
  %218 = vmatprep.subr.bf16.mxu0 0
  %219 = vmatpush1.bf16.msra.mxu0 %v191
  %220 = vmatprep.subr.bf16.mxu0 0
  %221 = vmatpush1.bf16.msra.mxu0 %v190
  %222 = vmatprep.subr.bf16.mxu0 0
  %223 = vmatpush2.bf16.msra.mxu0 0
  %224 = vmatprep.subr.bf16.mxu0 0
  %225 = vmatpush2.bf16.msra.mxu0 0
  %226 = vmatprep.subr.bf16.mxu0 0
  %227 = vmatpush2.bf16.msra.mxu0 0
  %228 = vmatprep.subr.bf16.mxu0 0
  %229 = vmatpush2.bf16.msra.mxu0 0
  %230 = vmatprep.subr.bf16.mxu0 0
  %231 = vmatpush2.bf16.msra.mxu0 0
  %232 = vmatprep.subr.bf16.mxu0 0
  %233 = vmatpush2.bf16.msra.mxu0 0
  %234 = vmatprep.subr.bf16.mxu0 0
  %235 = vmatpush2.bf16.msra.mxu0 0
  %236 = vmatprep.subr.bf16.mxu0 0
  %237 = vmatpush2.bf16.msra.mxu0 0
  %238 = vmatprep.mubr.bf16.mxu0 0
  %239 = vmatmul.mubr.bf16.gmra.mxu0 %v131
  %v240 = vpop.f32.mrf.mxu0
  %v241 = vadd.f32 %v156, %v240
  %v242 = vpop.f32.mrf.mxu0
  %v243 = vpop.f32.mrf.mxu0
  %v244 = vadd.f32 %v156, %v243
  %v245 = vpop.f32.mrf.mxu0
  %246 = vmatprep.mubr.bf16.mxu0 0
  %247 = vmatmul.mubr.bf16.gmra.mxu0 %v132
  %v248 = vpop.f32.mrf.mxu0
  %v249 = vadd.f32 %v156, %v248
  %v250 = vpop.f32.mrf.mxu0
  %v251 = vpop.f32.mrf.mxu0
  %v252 = vadd.f32 %v156, %v251
  %v253 = vpop.f32.mrf.mxu0
  %254 = vmatprep.mubr.bf16.mxu0 0
  %255 = vmatmul.mubr.bf16.gmra.mxu0 %v133
  %v256 = vpop.f32.mrf.mxu0
  %v257 = vadd.f32 %v156, %v256
  %v258 = vpop.f32.mrf.mxu0
  %v259 = vpop.f32.mrf.mxu0
  %v260 = vadd.f32 %v156, %v259
  %v261 = vpop.f32.mrf.mxu0
  %262 = vmatprep.mubr.bf16.mxu0 0
  %263 = vmatmul.mubr.bf16.gmra.mxu0 %v134
  %v264 = vpop.f32.mrf.mxu0
  %v265 = vadd.f32 %v156, %v264
  %v266 = vpop.f32.mrf.mxu0
  %v267 = vpop.f32.mrf.mxu0
  %v268 = vadd.f32 %v156, %v267
  %v269 = vpop.f32.mrf.mxu0
  %270 = vdwg.mxu0
  %271 = vmax.xlane.f32.xlu0 %v241
  %v272 = vpop.xlane.xlu0 %271
  %273 = vmax.xlane.f32.xlu0 %v244
  %v274 = vpop.xlane.xlu0 %273
  %275 = vmax.xlane.f32.xlu0 %v249
  %v276 = vpop.xlane.xlu0 %275
  %277 = vmax.xlane.f32.xlu0 %v252
  %v278 = vpop.xlane.xlu0 %277
  %279 = vmax.xlane.f32.xlu0 %v257
  %v280 = vpop.xlane.xlu0 %279
  %281 = vmax.xlane.f32.xlu0 %v260
  %v282 = vpop.xlane.xlu0 %281
  %283 = vmax.xlane.f32.xlu0 %v265
  %v284 = vpop.xlane.xlu0 %283
  %285 = vmax.xlane.f32.xlu0 %v268
  %v286 = vpop.xlane.xlu0 %285
  %v287 = vsub.f32 %v241, %v272
  %v288 = vsub.f32 %v244, %v274
  %v289 = vsub.f32 %v249, %v276
  %v290 = vsub.f32 %v252, %v278
  %v291 = vsub.f32 %v257, %v280
  %v292 = vsub.f32 %v260, %v282
  %v293 = vsub.f32 %v265, %v284
  %v294 = vsub.f32 %v268, %v286
  %v295 = vmul.f32 %v287, 1.442695
  %v296 = vpow.pop %v295
  %v297 = vmul.f32 %v288, 1.442695
  %v298 = vpow.pop %v297
  %v299 = vmul.f32 %v289, 1.442695
  %v300 = vpow.pop %v299
  %v301 = vmul.f32 %v290, 1.442695
  %v302 = vpow.pop %v301
  %v303 = vmul.f32 %v291, 1.442695
  %v304 = vpow.pop %v303
  %v305 = vmul.f32 %v292, 1.442695
  %v306 = vpow.pop %v305
  %v307 = vmul.f32 %v293, 1.442695
  %v308 = vpow.pop %v307
  %v309 = vmul.f32 %v294, 1.442695
  %v310 = vpow.pop %v309
  %311 = vadd.xlane.f32.xlu0 %v296
  %v312 = vpop.xlane.xlu0 %311
  %313 = vadd.xlane.f32.xlu0 %v298
  %v314 = vpop.xlane.xlu0 %313
  %315 = vadd.xlane.f32.xlu0 %v300
  %v316 = vpop.xlane.xlu0 %315
  %317 = vadd.xlane.f32.xlu0 %v302
  %v318 = vpop.xlane.xlu0 %317
  %319 = vadd.xlane.f32.xlu0 %v304
  %v320 = vpop.xlane.xlu0 %319
  %321 = vadd.xlane.f32.xlu0 %v306
  %v322 = vpop.xlane.xlu0 %321
  %323 = vadd.xlane.f32.xlu0 %v308
  %v324 = vpop.xlane.xlu0 %323
  %325 = vadd.xlane.f32.xlu0 %v310
  %v326 = vpop.xlane.xlu0 %325
  %v327 = vlog2.pop %v312
  %v328 = vmul.f32 %v327, 0.6931472
  %v329 = vlog2.pop %v314
  %v330 = vmul.f32 %v329, 0.6931472
  %v331 = vlog2.pop %v316
  %v332 = vmul.f32 %v331, 0.6931472
  %v333 = vlog2.pop %v318
  %v334 = vmul.f32 %v333, 0.6931472
  %v335 = vlog2.pop %v320
  %v336 = vmul.f32 %v335, 0.6931472
  %v337 = vlog2.pop %v322
  %v338 = vmul.f32 %v337, 0.6931472
  %v339 = vlog2.pop %v324
  %v340 = vmul.f32 %v339, 0.6931472
  %v341 = vlog2.pop %v326
  %v342 = vmul.f32 %v341, 0.6931472
  %v343 = vsub.f32 %v287, %v328
  %v344 = vsub.f32 %v288, %v330
  %v345 = vsub.f32 %v289, %v332
  %v346 = vsub.f32 %v290, %v334
  %v347 = vsub.f32 %v291, %v336
  %v348 = vsub.f32 %v292, %v338
  %v349 = vsub.f32 %v293, %v340
  %v350 = vsub.f32 %v294, %v342
  %v351 = vpack.c.bf16 %v344, %v343
  %v352 = vpack.c.bf16 %v346, %v345
  %v353 = vpack.c.bf16 %v348, %v347
  %v354 = vpack.c.bf16 %v350, %v349
  %v359 = vunpack.c.l.b16 %v351
  %v360 = vunpack.c.h.b16 %v351
  %v361 = vunpack.c.l.b16 %v352
  %v362 = vunpack.c.h.b16 %v352
  %v363 = vunpack.c.l.b16 %v353
  %v364 = vunpack.c.h.b16 %v353
  %v365 = vunpack.c.l.b16 %v354
  %v366 = vunpack.c.h.b16 %v354
  %v367 = vpack.c.b16 %v359, %v359
  %v368 = vpack.c.b16 %v360, %v360
  %v369 = vpack.c.b16 %v361, %v361
  %v370 = vpack.c.b16 %v362, %v362
  %v371 = vpack.c.b16 %v363, %v363
  %v372 = vpack.c.b16 %v364, %v364
  %v373 = vpack.c.b16 %v365, %v365
  %v374 = vpack.c.b16 %v366, %v366
  %383 = vst [vmem:[%s5] sm:$0xf] %v367
  %384 = vst [vmem:[%s5 + $0x4] sm:$0xf] %v368
  %385 = vst [vmem:[%s5 + $0x8] sm:$0xf] %v369
  %386 = vst [vmem:[%s5 + $0xc] sm:$0xf] %v370
  %387 = vst [vmem:[%s5 + $0x10] sm:$0xf] %v371
  %388 = vst [vmem:[%s5 + $0x14] sm:$0xf] %v372
  %389 = vst [vmem:[%s5 + $0x18] sm:$0xf] %v373
  %390 = vst [vmem:[%s5 + $0x1c] sm:$0xf] %v374
  // Predicated region
  $region22: #{actor_forward.1} parent=0 // pred_check
    _
  $region23: #{actor_forward.1} parent=0 // pred_check_branch
    %392 = sbr.rel (0) target = $region25
  $region24: #{actor_forward.1} parent=0 // pred_region
    _
  $region25: #{actor_forward.1} parent=0 // pred_fallthru
    _
  // Predicated region
  $region26: #{actor_forward.1} parent=0 // pred_check
    _
  $region27: #{actor_forward.1} parent=0 // pred_check_branch
    %394 = sbr.rel (0) target = $region29
  $region28: #{actor_forward.1} parent=0 // pred_region
    _
  $region29: #{actor_forward.1} parent=0 // pred_fallthru
    _

</llo_original>
